<compile_context>
chip_gen: v5e
topology: v5e:2x2
jax: 0.10.0
libtpu: 0.0.40
codegen_flags: <defaults>
</compile_context>

<pallas_src>
import numpy as np
import jax
import jax.numpy as jnp
from jax.experimental import pallas as pl
from jax.experimental.pallas import tpu as pltpu

BN_EPS = 1e-5


def _round_up(x, m):
    return ((x + m - 1) // m) * m


def _vmem_capacity_bytes():
    cap = 64 * 1024 * 1024          # conservative default (v7x per-TC VMEM)
    try:
        cap = int(pltpu.get_tpu_info().vmem_capacity_bytes)
    except Exception:
        pass
    return cap


def _pick_row_tile(Np, fits, cands=(2048, 1024, 512, 256, 128)):
    """Largest row tile dividing Np, keeping >=2 row tiles (v7x megacore) when
    possible, that passes the VMEM fit check."""
    for t in cands:
        if t > Np or Np % t:
            continue
        if Np >= 256 and Np // t < 2:
            continue
        if fits(t):
            return t
    return min(Np, 128)


# ---------------------------------------------------------------------------
# Pass 1: tiled O = (A @ P) [@ W] with fused per-row-tile BN partial sums.
#   apply_w  : True  -> P = X, finalize multiplies the accumulator by W
#              False -> P = Z (= X @ W_t precomputed)
#   resident : True  -> P is one VMEM-resident (Np, Kp) block, sliced per k
#              False -> P streamed as (tk, Kp) blocks per grid step
# ---------------------------------------------------------------------------
def _make_pass1_kernel(apply_w, resident, tk, compute_dtype):
    def kernel(*refs):
        if apply_w:
            a_ref, p_ref, w_ref, o_ref, sum_ref, ssq_ref, acc_ref = refs
        else:
            a_ref, p_ref, o_ref, sum_ref, ssq_ref, acc_ref = refs

        k = pl.program_id(1)

        @pl.when(k == 0)
        def _init():
            acc_ref[...] = jnp.zeros_like(acc_ref)

        # A may arrive at its original (e.g. f32) dtype when no host-side pad
        # was needed; cast per tile after the DMA.
        a = a_ref[...].astype(compute_dtype)
        if resident:
            start = pl.multiple_of(k * tk, tk)
            p = p_ref[pl.ds(start, tk), :]
        else:
            p = p_ref[...]
        acc_ref[...] += jnp.dot(a, p, preferred_element_type=jnp.float32)

        @pl.when(k == pl.num_programs(1) - 1)
        def _fin():
            if apply_w:
                o = jnp.dot(acc_ref[...].astype(w_ref.dtype), w_ref[...],
                            preferred_element_type=jnp.float32)
            else:
                o = acc_ref[...]
            o_ref[...] = o.astype(o_ref.dtype)
            # BN partial sums from the f32 values (before any bf16 store).
            sum_ref[...] = jnp.sum(o, axis=0).reshape(sum_ref.shape)
            ssq_ref[...] = jnp.sum(o * o, axis=0).reshape(ssq_ref.shape)

    return kernel


def linear_kernel(x_ref, w_ref, z_ref):
    # Row-tiled Z = X @ W_t (only used on the in_dim > out_dim path).
    z_ref[...] = jnp.dot(x_ref[...], w_ref[...],
                         preferred_element_type=jnp.float32).astype(z_ref.dtype)


# ---------------------------------------------------------------------------
# Pass 2: fused BatchNorm (pre-folded per-column scale/shift) + ReLU epilogue.
# ---------------------------------------------------------------------------
def bn_relu_kernel(o_ref, scale_ref, shift_ref, y_ref):
    y = o_ref[...].astype(jnp.float32) * scale_ref[...] + shift_ref[...]
    y_ref[...] = jnp.maximum(y, 0.0).astype(y_ref.dtype)


# ---------------------------------------------------------------------------
# Wrapper
# ---------------------------------------------------------------------------
def graph_convolution(X, A, W_t, gamma, beta, *,
                      mxu_dtype=jnp.bfloat16, resident_cap_bytes=None):
    """GraphConvolution forward.

    X: [N, in_dim], A: [N, N], W_t: [in_dim, out_dim] (= Linear.weight.T),
    gamma/beta: [out_dim] BatchNorm1d affine params.  Returns f32 [N, out_dim].
    """
    f32 = jnp.float32
    N, in_dim = X.shape
    out_dim = W_t.shape[1]
    assert A.shape == (N, N)

    mxu_dtype = np.dtype(mxu_dtype)
    mxu_item = mxu_dtype.itemsize

    Fp = _round_up(out_dim, 128)
    Kin = _round_up(in_dim, 128)
    Np = _round_up(N, 128)               # 128-row padding only (not tile-sized)

    vmem_cap = _vmem_capacity_bytes()
    vmem_budget = (vmem_cap * 3) // 4     # ~25% headroom for tile selection
    vmem_limit = (vmem_cap * 7) // 8
    if resident_cap_bytes is None:
        resident_cap_bytes = min(vmem_budget // 4, 16 * 1024 * 1024)

    # --- A operand: avoid host-side copies whenever possible -----------------
    if N == Np:
        A_in = A                          # zero-copy; kernel casts per tile
    else:
        # Padding is unavoidable: fuse the 128-pad and MXU-dtype cast into a
        # single copy (halves the padded copy + kernel A stream for bf16).
        A_in = jnp.zeros((Np, Np), mxu_dtype).at[:N, :N].set(A.astype(mxu_dtype))
    a_item = np.dtype(A_in.dtype).itemsize

    X_p = jnp.zeros((Np, Kin), mxu_dtype).at[:N, :in_dim].set(X.astype(mxu_dtype))
    W_p = jnp.zeros((Kin, Fp), mxu_dtype).at[:in_dim, :out_dim].set(
        W_t.astype(mxu_dtype))

    # O intermediate dtype: bf16 on the bf16 MXU path (stats stay f32).
    o_dtype = jnp.bfloat16 if mxu_item < 4 else f32
    o_item = np.dtype(o_dtype).itemsize

    apply_w = in_dim <= out_dim
    if apply_w:
        # (A @ X) @ W : contraction feature width = padded in_dim.
        Kp, Kacc = Kin, Kin
        P_full = X_p
    else:
        # A @ (X @ W) : precompute Z with a small row-tiled linear kernel.
        def lin_fits(t):
            return (2 * t * Kin * mxu_item + 2 * Kin * Fp * mxu_item
                    + 2 * t * Fp * mxu_item) <= vmem_budget

        lt = _pick_row_tile(Np, lin_fits)
        P_full = pl.pallas_call(
            linear_kernel,
            out_shape=jax.ShapeDtypeStruct((Np, Fp), mxu_dtype),
            grid=(Np // lt,),
            in_specs=[pl.BlockSpec((lt, Kin), lambda i: (i, 0)),
                      pl.BlockSpec((Kin, Fp), lambda i: (0, 0))],
            out_specs=pl.BlockSpec((lt, Fp), lambda i: (i, 0)),
            compiler_params=pltpu.CompilerParams(
                dimension_semantics=("parallel",),
                vmem_limit_bytes=vmem_limit),
        )(X_p, W_p)
        Kp, Kacc = Fp, Fp

    # Make the feature operand fully VMEM-resident when it fits (DMA'd once
    # instead of once per row tile).
    resident = (2 * Np * Kp * mxu_item) <= resident_cap_bytes

    # --- pass-1 tile selection from the real per-step working set ------------
    def pass1_fits(tm_, tk_):
        b = 2 * tm_ * tk_ * a_item                                    # A (x2 buf)
        b += (2 * Np * Kp * mxu_item) if resident else (2 * tk_ * Kp * mxu_item)
        if apply_w:
            b += 2 * Kin * Fp * mxu_item                              # W (const)
        b += 2 * tm_ * Fp * o_item                                    # O block
        b += 4 * 2 * Fp * 4                                           # sum/ssq
        b += tm_ * Kacc * 4                                           # f32 acc
        return b <= vmem_budget

    tm, tk = 128, 128
    for cm in (1024, 512, 256, 128):
        if Np % cm or (Np >= 256 and Np // cm < 2):   # keep >=2 row tiles (v7x)
            continue
        picked = None
        for ck in (1024, 512, 256, 128):
            if Np % ck:
                continue
            if pass1_fits(cm, ck):
                picked = ck
                break
        if picked is not None:
            tm, tk = cm, picked
            break
    n_i, n_k = Np // tm, Np // tk

    a_spec = pl.BlockSpec((tm, tk), lambda i, k: (i, k))
    if resident:
        p_spec = pl.BlockSpec((Np, Kp), lambda i, k: (0, 0))
    else:
        p_spec = pl.BlockSpec((tk, Kp), lambda i, k: (k, 0))

    operands = [A_in, P_full]
    in_specs = [a_spec, p_spec]
    if apply_w:
        operands.append(W_p)
        in_specs.append(pl.BlockSpec((Kin, Fp), lambda i, k: (0, 0)))

    if apply_w:
        flops = 2 * Np * Np * Kin + 2 * Np * Kin * Fp
    else:
        flops = 2 * Np * Np * Fp
    p_bytes = Np * Kp * mxu_item if resident else n_i * Np * Kp * mxu_item
    bytes_accessed = int(Np * Np * a_item + p_bytes
                         + (Kin * Fp * mxu_item if apply_w else 0)
                         + Np * Fp * o_item + 2 * n_i * Fp * 4)

    kernel = _make_pass1_kernel(apply_w, resident, tk, mxu_dtype)

    O, psum, pssq = pl.pallas_call(
        kernel,
        out_shape=(
            jax.ShapeDtypeStruct((Np, Fp), o_dtype),    # O = A @ X @ W (pre-BN)
            jax.ShapeDtypeStruct((n_i, 1, Fp), f32),    # per-row-tile col sum
            jax.ShapeDtypeStruct((n_i, 1, Fp), f32),    # per-row-tile col sum(x^2)
        ),
        grid=(n_i, n_k),
        in_specs=in_specs,
        out_specs=(
            pl.BlockSpec((tm, Fp), lambda i, k: (i, 0)),
            pl.BlockSpec((1, 1, Fp), lambda i, k: (i, 0, 0)),
            pl.BlockSpec((1, 1, Fp), lambda i, k: (i, 0, 0)),
        ),
        scratch_shapes=[pltpu.VMEM((tm, Kacc), f32)],
        compiler_params=pltpu.CompilerParams(
            dimension_semantics=("parallel", "arbitrary"),
            vmem_limit_bytes=vmem_limit),
        cost_estimate=pl.CostEstimate(flops=int(flops), transcendentals=0,
                                      bytes_accessed=bytes_accessed),
    )(*operands)

    # Global BatchNorm1d statistics over the true N rows (padded rows/cols of
    # A, X, W are exactly zero, so padded rows of O drop out of the sums).
    # gamma/beta are folded into a single per-column scale/shift so the
    # epilogue is one FMA + ReLU per element.
    col_sum = jnp.sum(psum, axis=0).reshape(1, Fp)
    col_ssq = jnp.sum(pssq, axis=0).reshape(1, Fp)
    mean = col_sum / N
    # TODO(synk): E[x^2]-mean^2 can cancel when |mean| >> std; production shapes
    # may want a two-pass / compensated variance.
    var = jnp.maximum(col_ssq / N - mean * mean, 0.0)   # biased (training) var
    inv_std = jax.lax.rsqrt(var + BN_EPS)
    gamma_p = jnp.zeros((1, Fp), f32).at[:, :out_dim].set(
        jnp.asarray(gamma, f32).reshape(1, -1))
    beta_p = jnp.zeros((1, Fp), f32).at[:, :out_dim].set(
        jnp.asarray(beta, f32).reshape(1, -1))
    scale = gamma_p * inv_std
    shift = beta_p - mean * scale

    # Pass 2: memory-bound FMA+ReLU — use its own (bigger) row tile.
    def pass2_fits(t):
        return (2 * t * Fp * o_item + 2 * t * Fp * 4 + 4 * Fp * 4) <= vmem_budget

    t2 = _pick_row_tile(Np, pass2_fits)
    Y = pl.pallas_call(
        bn_relu_kernel,
        out_shape=jax.ShapeDtypeStruct((Np, Fp), f32),
        grid=(Np // t2,),
        in_specs=[pl.BlockSpec((t2, Fp), lambda i: (i, 0)),
                  pl.BlockSpec((1, Fp), lambda i: (0, 0)),
                  pl.BlockSpec((1, Fp), lambda i: (0, 0))],
        out_specs=pl.BlockSpec((t2, Fp), lambda i: (i, 0)),
        compiler_params=pltpu.CompilerParams(
            dimension_semantics=("parallel",),
            vmem_limit_bytes=vmem_limit),
    )(O, scale, shift)

    # TODO(synk): BatchNorm1d running_mean/running_var momentum updates (a
    # training-time side effect) and eval-mode normalization are not modeled.
    return Y[:N, :out_dim]


# ---------------------------------------------------------------------------
# Pure-JAX reference (same association / cast points as the kernel policy).
# ---------------------------------------------------------------------------
def reference(X, A, W_t, gamma, beta, mxu_dtype=jnp.float32):
    f32 = jnp.float32
    Ac, Xc, Wc = A.astype(mxu_dtype), X.astype(mxu_dtype), W_t.astype(mxu_dtype)
    if X.shape[1] <= W_t.shape[1]:
        M = jnp.dot(Ac, Xc, preferred_element_type=f32)
        O = jnp.dot(M.astype(mxu_dtype), Wc, preferred_element_type=f32)
    else:
        Z = jnp.dot(Xc, Wc, preferred_element_type=f32).astype(mxu_dtype)
        O = jnp.dot(Ac, Z, preferred_element_type=f32)
    mean = O.mean(axis=0, keepdims=True)
    var = ((O - mean) ** 2).mean(axis=0, keepdims=True)
    y = (O - mean) * jax.lax.rsqrt(var + BN_EPS) * gamma.reshape(1, -1) \
        + beta.reshape(1, -1)
    return jnp.maximum(y, 0.0)


if __name__ == "__main__":
    key = jax.random.PRNGKey(0)

    def make_inputs(k, N, in_dim, out_dim):
        kx, ka, kw = jax.random.split(k, 3)
        X = jax.random.normal(kx, (N, in_dim), dtype=jnp.float32)
        A_raw = jax.random.uniform(ka, (N, N), dtype=jnp.float32)
        A = (A_raw + A_raw.T) * 0.5            # symmetric "adjacency-like"
        bound = 1.0 / (in_dim ** 0.5)
        W = jax.random.uniform(kw, (out_dim, in_dim), dtype=jnp.float32,
                               minval=-bound, maxval=bound)
        gamma = jnp.ones((out_dim,), jnp.float32)
        beta = jnp.zeros((out_dim,), jnp.float32)
        return X, A, W.T, gamma, beta

    k1, k2 = jax.random.split(key)

    # Case 1: in_dim <= out_dim ((A@X)@W path), N not 128-aligned (padded A).
    X, A, W_t, gamma, beta = make_inputs(k1, 200, 32, 64)

    # 1a) f32 MXU path: tight structural validation of the tiled kernels.
    out = jax.block_until_ready(
        graph_convolution(X, A, W_t, gamma, beta, mxu_dtype=jnp.float32))
    ref = reference(X, A, W_t, gamma, beta, mxu_dtype=jnp.float32)
    assert out.shape == (200, 64)
    assert jnp.allclose(out, ref, atol=1e-3, rtol=1e-3), \
        float(jnp.max(jnp.abs(out - ref)))

    # 1b) bf16 default (bf16 A/X/W, bf16 O intermediate) vs matched-precision ref.
    out = jax.block_until_ready(graph_convolution(X, A, W_t, gamma, beta))
    ref = reference(X, A, W_t, gamma, beta, mxu_dtype=jnp.bfloat16)
    assert jnp.allclose(out, ref, atol=2e-2, rtol=2e-2), \
        float(jnp.max(jnp.abs(out - ref)))

    # Case 2: in_dim > out_dim (A@(X@W) path), N already 128-aligned so A goes
    # to the kernel with zero host-side copies; multi-k accumulation exercised.
    X2, A2, W_t2, gamma2, beta2 = make_inputs(k2, 384, 96, 48)
    out2 = jax.block_until_ready(graph_convolution(X2, A2, W_t2, gamma2, beta2))
    ref2 = reference(X2, A2, W_t2, gamma2, beta2, mxu_dtype=jnp.bfloat16)
    assert out2.shape == (384, 48)
    assert jnp.allclose(out2, ref2, atol=2e-2, rtol=2e-2), \
        float(jnp.max(jnp.abs(out2 - ref2)))

    # Case 3: same shapes, forcing the streamed (non-resident) Z path.
    out3 = jax.block_until_ready(
        graph_convolution(X2, A2, W_t2, gamma2, beta2, resident_cap_bytes=0))
    assert jnp.allclose(out3, ref2, atol=2e-2, rtol=2e-2), \
        float(jnp.max(jnp.abs(out3 - ref2)))

    print("KERNEL_OK")
</pallas_src>

<mosaic_0001>
module attributes {stable_mosaic.version = 11 : i64} {
  func.func @kernel(%arg0: i32, %arg1: i32, %arg2: memref<128x256xf32, #tpu.memory_space<vmem>>, %arg3: memref<256x128xf32, #tpu.memory_space<vmem>>, %arg4: memref<128x128xf32, #tpu.memory_space<vmem>>, %arg5: memref<128x128xf32, #tpu.memory_space<vmem>>, %arg6: memref<1x1x128xf32, #tpu.memory_space<vmem>>, %arg7: memref<1x1x128xf32, #tpu.memory_space<vmem>>, %arg8: memref<128x128xf32, #tpu.memory_space<vmem>>) attributes {dimension_semantics = [#tpu.dimension_semantics<parallel>, #tpu.dimension_semantics<arbitrary>], iteration_bounds = array<i64: 2, 1>, scalar_prefetch = 0 : i64, scratch_operands = 1 : i64, tpu.core_type = #tpu.core_type<tc>, window_params = [{transform_indices = @transform_0, window_bounds = array<i64: 128, 256>}, {pipeline_mode = #tpu.pipeline_mode<synchronous>, transform_indices = @transform_1, window_bounds = array<i64: 256, 128>}, {pipeline_mode = #tpu.pipeline_mode<synchronous>, transform_indices = @transform_2, window_bounds = array<i64: 128, 128>}, {transform_indices = @transform_3, window_bounds = array<i64: 128, 128>}, {transform_indices = @transform_4, window_bounds = array<i64: 1, 1, 128>}, {transform_indices = @transform_5, window_bounds = array<i64: 1, 1, 128>}]} {
    %c0_i32 = arith.constant 0 : i32
    %0 = arith.cmpi eq, %arg1, %c0_i32 : i32
    %1 = arith.extui %0 : i1 to i32
    %c0_i32_0 = arith.constant 0 : i32
    %2 = arith.cmpi ne, %1, %c0_i32_0 : i32
    scf.if %2 {
      %cst_9 = arith.constant 0.000000e+00 : f32
      %15 = vector.broadcast %cst_9 : f32 to vector<128x128xf32>
      %c0_10 = arith.constant 0 : index
      %c0_11 = arith.constant 0 : index
      %16 = vector.load %arg8[%c0_10, %c0_11] : memref<128x128xf32, #tpu.memory_space<vmem>>, vector<128x128xf32>
      tpu.vector_store %arg8[%c0_10, %c0_11], %15 {strides = array<i32>} : memref<128x128xf32, #tpu.memory_space<vmem>>, vector<128x128xf32>,
    } else {
    }
    %c0 = arith.constant 0 : index
    %c0_1 = arith.constant 0 : index
    %3 = vector.load %arg2[%c0, %c0_1] : memref<128x256xf32, #tpu.memory_space<vmem>>, vector<128x256xf32>
    %c256_i32 = arith.constant 256 : i32
    %4 = arith.muli %arg1, %c256_i32 : i32
    %5 = tpu.assume_multiple %4, 256 : i32
    %6 = arith.index_cast %5 : i32 to index
    %c0_2 = arith.constant 0 : index
    %7 = vector.load %arg3[%6, %c0_2] : memref<256x128xf32, #tpu.memory_space<vmem>>, vector<256x128xf32>
    %c0_3 = arith.constant 0 : index
    %c0_4 = arith.constant 0 : index
    %8 = vector.load %arg8[%c0_3, %c0_4] : memref<128x128xf32, #tpu.memory_space<vmem>>, vector<128x128xf32>
    %cst = arith.constant dense<0.000000e+00> : vector<128x128xf32>
    %9 = tpu.matmul %3, %7, %cst {dimension_numbers = #tpu.dot_dimension_numbers<[1], [0], [0], [1], [0, 0, 1, 1], [], []>} : vector<128x256xf32>, vector<256x128xf32>, vector<128x128xf32> -> vector<128x128xf32>
    %10 = arith.addf %8, %9 : vector<128x128xf32>
    %c0_5 = arith.constant 0 : index
    %c0_6 = arith.constant 0 : index
    %11 = vector.load %arg8[%c0_5, %c0_6] : memref<128x128xf32, #tpu.memory_space<vmem>>, vector<128x128xf32>
    tpu.vector_store %arg8[%c0_5, %c0_6], %10 {strides = array<i32>} : memref<128x128xf32, #tpu.memory_space<vmem>>, vector<128x128xf32>,
    %c0_i32_7 = arith.constant 0 : i32
    %12 = arith.cmpi eq, %arg1, %c0_i32_7 : i32
    %13 = arith.extui %12 : i1 to i32
    %c0_i32_8 = arith.constant 0 : i32
    %14 = arith.cmpi ne, %13, %c0_i32_8 : i32
    scf.if %14 {
      %c0_9 = arith.constant 0 : index
      %c0_10 = arith.constant 0 : index
      %15 = vector.load %arg8[%c0_9, %c0_10] : memref<128x128xf32, #tpu.memory_space<vmem>>, vector<128x128xf32>
      %c0_11 = arith.constant 0 : index
      %c0_12 = arith.constant 0 : index
      %16 = vector.load %arg4[%c0_11, %c0_12] : memref<128x128xf32, #tpu.memory_space<vmem>>, vector<128x128xf32>
      %cst_13 = arith.constant dense<0.000000e+00> : vector<128x128xf32>
      %17 = tpu.matmul %15, %16, %cst_13 {dimension_numbers = #tpu.dot_dimension_numbers<[1], [0], [0], [1], [0, 0, 1, 1], [], []>} : vector<128x128xf32>, vector<128x128xf32>, vector<128x128xf32> -> vector<128x128xf32>
      %c0_14 = arith.constant 0 : index
      %c0_15 = arith.constant 0 : index
      %18 = vector.load %arg5[%c0_14, %c0_15] : memref<128x128xf32, #tpu.memory_space<vmem>>, vector<128x128xf32>
      tpu.vector_store %arg5[%c0_14, %c0_15], %17 {strides = array<i32>} : memref<128x128xf32, #tpu.memory_space<vmem>>, vector<128x128xf32>,
      %cst_16 = arith.constant dense<0.000000e+00> : vector<128xf32>
      %19 = vector.multi_reduction <add>, %17, %cst_16 [0] : vector<128x128xf32> to vector<128xf32>
      %20 = vector.shape_cast %19 : vector<128xf32> to vector<1x1x128xf32>
      %c0_17 = arith.constant 0 : index
      %c0_18 = arith.constant 0 : index
      %c0_19 = arith.constant 0 : index
      %21 = vector.load %arg6[%c0_17, %c0_18, %c0_19] : memref<1x1x128xf32, #tpu.memory_space<vmem>>, vector<1x1x128xf32>
      tpu.vector_store %arg6[%c0_17, %c0_18, %c0_19], %20 {strides = array<i32>} : memref<1x1x128xf32, #tpu.memory_space<vmem>>, vector<1x1x128xf32>,
      %22 = arith.mulf %17, %17 : vector<128x128xf32>
      %cst_20 = arith.constant dense<0.000000e+00> : vector<128xf32>
      %23 = vector.multi_reduction <add>, %22, %cst_20 [0] : vector<128x128xf32> to vector<128xf32>
      %24 = vector.shape_cast %23 : vector<128xf32> to vector<1x1x128xf32>
      %c0_21 = arith.constant 0 : index
      %c0_22 = arith.constant 0 : index
      %c0_23 = arith.constant 0 : index
      %25 = vector.load %arg7[%c0_21, %c0_22, %c0_23] : memref<1x1x128xf32, #tpu.memory_space<vmem>>, vector<1x1x128xf32>
      tpu.vector_store %arg7[%c0_21, %c0_22, %c0_23], %24 {strides = array<i32>} : memref<1x1x128xf32, #tpu.memory_space<vmem>>, vector<1x1x128xf32>,
    } else {
    }
    return
  }
  func.func @transform_0(%arg0: i32, %arg1: i32) -> (i32, i32) {
    %c0_i32 = arith.constant 0 : i32
    return %arg0, %arg1 : i32, i32
  }
  func.func @transform_1(%arg0: i32, %arg1: i32) -> (i32, i32) {
    %c0_i32 = arith.constant 0 : i32
    %c0_i32_0 = arith.constant 0 : i32
    %c0_i32_1 = arith.constant 0 : i32
    return %c0_i32, %c0_i32_0 : i32, i32
  }
  func.func @transform_2(%arg0: i32, %arg1: i32) -> (i32, i32) {
    %c0_i32 = arith.constant 0 : i32
    %c0_i32_0 = arith.constant 0 : i32
    %c0_i32_1 = arith.constant 0 : i32
    return %c0_i32, %c0_i32_0 : i32, i32
  }
  func.func @transform_3(%arg0: i32, %arg1: i32) -> (i32, i32) {
    %c0_i32 = arith.constant 0 : i32
    %c0_i32_0 = arith.constant 0 : i32
    return %arg0, %c0_i32 : i32, i32
  }
  func.func @transform_4(%arg0: i32, %arg1: i32) -> (i32, i32, i32) {
    %c0_i32 = arith.constant 0 : i32
    %c0_i32_0 = arith.constant 0 : i32
    %c0_i32_1 = arith.constant 0 : i32
    return %arg0, %c0_i32, %c0_i32_0 : i32, i32, i32
  }
  func.func @transform_5(%arg0: i32, %arg1: i32) -> (i32, i32, i32) {
    %c0_i32 = arith.constant 0 : i32
    %c0_i32_0 = arith.constant 0 : i32
    %c0_i32_1 = arith.constant 0 : i32
    return %arg0, %c0_i32, %c0_i32_0 : i32, i32, i32
  }
}

</mosaic_0001>

<llo_original>
// kernel: tpu_custom_call.1
$region0: #{tpu_custom_call.1}
  #allocation0 [shape = 'u32[]', space=smem, size = 0x4, offset = 0x4, fixed_abs, tag = 'smem constant byte address 0x4 - core index']
  #allocation1 [shape = 'u32[72,128]{1,0:T(1,128)}', space=vmem, size = 0x9000, scoped, tag = 'internal scratch']
  #allocation2 [shape = 'f32[128,128]{1,0:T(8,128)}', space=vmem, size = 0x10000, scoped, tag = 'scratch operand']
  %s0 = inlined_call_operand.hbm [shape: f32[256,256], index: 0, kind: input, shape index: {}]
  %s1 = inlined_call_operand.hbm [shape: f32[256,128], index: 1, kind: input, shape index: {}]
  %s2 = inlined_call_operand.hbm [shape: f32[128,128], index: 2, kind: input, shape index: {}]
  %s3 = inlined_call_operand.hbm [shape: f32[256,128], index: 3, kind: output, shape index: {0}]
  %s4 = inlined_call_operand.hbm [shape: f32[2,1,128], index: 4, kind: output, shape index: {1}]
  %s5 = inlined_call_operand.hbm [shape: f32[2,1,128], index: 5, kind: output, shape index: {2}]
  %6 = xla_tuple %s3, %s4, %s5
  %s7 = sld [smem:[#allocation0]]
  $region81: #{tpu_custom_call.1} parent=0
    _
  %s9 = ssub.s32 1, %s7
  %s10 = scalar_select 0, %s9, %s7
  $region1: #{tpu_custom_call.1} parent=0
    #allocation3 [shape = 'u8[262144]{0}', space=vmem, size = 0x40000, scoped, tag = 'input window, operand 0']
    #allocation4 [shape = 's32[2]{0}', space=sflag, size = 0x8, scoped, tag = 'scoped memory for tpu_custom_call.1']
    #allocation5 [shape = 's32[2]{0}', space=sflag, size = 0x8, scoped, tag = 'scoped memory for tpu_custom_call.1']
    #allocation6 [shape = 'u8[131072]{0}', space=vmem, size = 0x20000, scoped, tag = 'input window, operand 1, single buffered']
    #allocation7 [shape = 's32[1]{0}', space=sflag, size = 0x4, scoped, tag = 'scoped memory for tpu_custom_call.1']
    #allocation8 [shape = 'u8[65536]{0}', space=vmem, size = 0x10000, scoped, tag = 'input window, operand 2, single buffered']
    #allocation9 [shape = 'u8[131072]{0}', space=vmem, size = 0x20000, scoped, tag = 'output window, operand 0']
    #allocation10 [shape = 'u8[1024]{0}', space=vmem, size = 0x400, scoped, tag = 'output window, operand 1']
    #allocation11 [shape = 's32[2]{0}', space=sflag, size = 0x8, scoped, tag = 'scoped memory for tpu_custom_call.1']
    #allocation12 [shape = 'u8[1024]{0}', space=vmem, size = 0x400, scoped, tag = 'output window, operand 2']
    %11 = vsyncpa [#allocation4], 0
    %s12 = scalar_lea.sflag [#allocation4], 1
    %13 = vsyncpa %s12, 0
    %14 = vsyncpa [#allocation7], 0
    %15 = vsyncpa [#allocation5], 0
    %s16 = scalar_lea.sflag [#allocation5], 1
    %17 = vsyncpa %s16, 0
    %18 = vsyncpa [#allocation11], 0
    %s19 = scalar_lea.sflag [#allocation11], 1
    %20 = vsyncpa %s19, 0
    loop: start=0, step=1, limit=4
    $region2: #{tpu_custom_call.1} parent=1 // loop_pre_header
      _
    $region3: #{tpu_custom_call.1} parent=1 // loop_header
      %s22 = sphi 0, %s26
      %p23 = scmp.ge.s32.totalorder %s22, 4
      %s29 = sphi 0, %s41
      %s30 = sphi 0, %s37
      %s31 = sphi 0, %s29
      %s32 = sphi 0, %s30
      %s33 = sphi 0, %s31
      %s34 = sphi 0, %s32
      %s46 = sphi 0, %s48
      %s49 = sphi 0, %s46
      %s50 = sphi 0, %s49
      %s66 = sphi 0, %s50
      %s70 = sphi 0, %s70
      %s72 = sphi 0, %s70
      %s73 = sphi 0, %s72
      %s87 = sphi 0, %s73
      %s91 = sphi 0, %s91
      %s93 = sphi 0, %s91
      %s94 = sphi 0, %s93
      %s108 = sphi 0, %s94
      %s114 = sphi 0, %s116
      %s117 = sphi 0, %s114
      %s118 = sphi 0, %s117
      %s134 = sphi 0, %s118
      %s140 = sphi 0, %s142
      %s143 = sphi 0, %s140
      %s144 = sphi 0, %s143
      %s160 = sphi 0, %s144
      %s166 = sphi 0, %s168
      %s169 = sphi 0, %s166
      %s170 = sphi 0, %s169
      %s186 = sphi 0, %s170
    $region4: #{tpu_custom_call.1} parent=1 // loop_header_branch
      %25 = sbr.rel (%p23) target = $region8
    $region5: #{tpu_custom_call.1} parent=1 // loop_body
      %s27 = ssub.s32 %s22, 1
      %s28 = ssub.s32 %s22, 2
      %s35 = sadd.s32 1, %s30
      %p36 = scmp.ge.s32.totalorder %s35, 1
      %s37 = scalar_select %p36, 0, %s35
      %s38 = sadd.s32 1, %s29
      %s39 = scalar_select %p36, %s38, %s29
      %p40 = scmp.ge.s32.totalorder %s39, 2
      %s41 = scalar_select %p40, 0, %s39
      %s42 = ssub.s32 %s29, %s41
      %s43 = ssub.s32 %s30, %s37
      %s44 = sor.u32 %s42, %s43
      %p45 = scmp.eq.s32.totalorder %s44, 0
      %s47 = sadd.s32 %s46, 1
      %s48 = scalar_select %p45, %s46, %s47
      %p51 = pneg %p45
      %p52 = scmp.eq.s32.totalorder %s22, 1
      %p53 = por %p51, %p52
      %p54 = scmp.ne.s32.totalorder %s46, %s49
      %p55 = scmp.eq.s32.totalorder %s22, 0
      %p56 = por %p54, %p55
      %p57 = scmp.ne.s32.totalorder %s46, %s49
      %p58 = scmp.eq.s32.totalorder %s27, 1
      %p59 = por %p57, %p58
      %p60 = scmp.ne.s32.totalorder %s49, %s50
      %p61 = scmp.eq.s32.totalorder %s27, 0
      %p62 = por %p60, %p61
      %p63 = scmp.ne.s32.totalorder %s49, %s50
      %p64 = scmp.eq.s32.totalorder %s28, 1
      %p65 = por %p63, %p64
      %p67 = scmp.ne.s32.totalorder %s50, %s66
      %p68 = scmp.eq.s32.totalorder %s28, 0
      %p69 = por %p67, %p68
      %s71 = sadd.s32 %s70, 1
      %p74 = scmp.eq.s32.totalorder %s22, 1
      %p75 = scmp.ne.s32.totalorder %s70, %s72
      %p76 = scmp.eq.s32.totalorder %s22, 0
      %p77 = por %p75, %p76
      %p78 = scmp.ne.s32.totalorder %s70, %s72
      %p79 = scmp.eq.s32.totalorder %s27, 1
      %p80 = por %p78, %p79
      %p81 = scmp.ne.s32.totalorder %s72, %s73
      %p82 = scmp.eq.s32.totalorder %s27, 0
      %p83 = por %p81, %p82
      %p84 = scmp.ne.s32.totalorder %s72, %s73
      %p85 = scmp.eq.s32.totalorder %s28, 1
      %p86 = por %p84, %p85
      %p88 = scmp.ne.s32.totalorder %s73, %s87
      %p89 = scmp.eq.s32.totalorder %s28, 0
      %p90 = por %p88, %p89
      %s92 = sadd.s32 %s91, 1
      %p95 = scmp.eq.s32.totalorder %s22, 1
      %p96 = scmp.ne.s32.totalorder %s91, %s93
      %p97 = scmp.eq.s32.totalorder %s22, 0
      %p98 = por %p96, %p97
      %p99 = scmp.ne.s32.totalorder %s91, %s93
      %p100 = scmp.eq.s32.totalorder %s27, 1
      %p101 = por %p99, %p100
      %p102 = scmp.ne.s32.totalorder %s93, %s94
      %p103 = scmp.eq.s32.totalorder %s27, 0
      %p104 = por %p102, %p103
      %p105 = scmp.ne.s32.totalorder %s93, %s94
      %p106 = scmp.eq.s32.totalorder %s28, 1
      %p107 = por %p105, %p106
      %p109 = scmp.ne.s32.totalorder %s94, %s108
      %p110 = scmp.eq.s32.totalorder %s28, 0
      %p111 = por %p109, %p110
      %s112 = ssub.s32 %s29, %s41
      %p113 = scmp.eq.s32.totalorder %s112, 0
      %s115 = sadd.s32 %s114, 1
      %s116 = scalar_select %p113, %s114, %s115
      %p119 = pneg %p113
      %p120 = scmp.eq.s32.totalorder %s22, 1
      %p121 = por %p119, %p120
      %p122 = scmp.ne.s32.totalorder %s114, %s117
      %p123 = scmp.eq.s32.totalorder %s22, 0
      %p124 = por %p122, %p123
      %p125 = scmp.ne.s32.totalorder %s114, %s117
      %p126 = scmp.eq.s32.totalorder %s27, 1
      %p127 = por %p125, %p126
      %p128 = scmp.ne.s32.totalorder %s117, %s118
      %p129 = scmp.eq.s32.totalorder %s27, 0
      %p130 = por %p128, %p129
      %p131 = scmp.ne.s32.totalorder %s117, %s118
      %p132 = scmp.eq.s32.totalorder %s28, 1
      %p133 = por %p131, %p132
      %p135 = scmp.ne.s32.totalorder %s118, %s134
      %p136 = scmp.eq.s32.totalorder %s28, 0
      %p137 = por %p135, %p136
      %s138 = ssub.s32 %s29, %s41
      %p139 = scmp.eq.s32.totalorder %s138, 0
      %s141 = sadd.s32 %s140, 1
      %s142 = scalar_select %p139, %s140, %s141
      %p145 = pneg %p139
      %p146 = scmp.eq.s32.totalorder %s22, 1
      %p147 = por %p145, %p146
      %p148 = scmp.ne.s32.totalorder %s140, %s143
      %p149 = scmp.eq.s32.totalorder %s22, 0
      %p150 = por %p148, %p149
      %p151 = scmp.ne.s32.totalorder %s140, %s143
      %p152 = scmp.eq.s32.totalorder %s27, 1
      %p153 = por %p151, %p152
      %p154 = scmp.ne.s32.totalorder %s143, %s144
      %p155 = scmp.eq.s32.totalorder %s27, 0
      %p156 = por %p154, %p155
      %p157 = scmp.ne.s32.totalorder %s143, %s144
      %p158 = scmp.eq.s32.totalorder %s28, 1
      %p159 = por %p157, %p158
      %p161 = scmp.ne.s32.totalorder %s144, %s160
      %p162 = scmp.eq.s32.totalorder %s28, 0
      %p163 = por %p161, %p162
      %s164 = ssub.s32 %s29, %s41
      %p165 = scmp.eq.s32.totalorder %s164, 0
      %s167 = sadd.s32 %s166, 1
      %s168 = scalar_select %p165, %s166, %s167
      %p171 = pneg %p165
      %p172 = scmp.eq.s32.totalorder %s22, 1
      %p173 = por %p171, %p172
      %p174 = scmp.ne.s32.totalorder %s166, %s169
      %p175 = scmp.eq.s32.totalorder %s22, 0
      %p176 = por %p174, %p175
      %p177 = scmp.ne.s32.totalorder %s166, %s169
      %p178 = scmp.eq.s32.totalorder %s27, 1
      %p179 = por %p177, %p178
      %p180 = scmp.ne.s32.totalorder %s169, %s170
      %p181 = scmp.eq.s32.totalorder %s27, 0
      %p182 = por %p180, %p181
      %p183 = scmp.ne.s32.totalorder %s169, %s170
      %p184 = scmp.eq.s32.totalorder %s28, 1
      %p185 = por %p183, %p184
      %p187 = scmp.ne.s32.totalorder %s170, %s186
      %p188 = scmp.eq.s32.totalorder %s28, 0
      %p189 = por %p187, %p188
      %p190 = scmp.le.s32.totalorder 1, %s22
      %p191 = scmp.lt.s32.totalorder %s22, 3
      %p192 = pnand %p190, %p191
      %p193 = pneg %p192
      // Predicated region
      $region9: #{tpu_custom_call.1} parent=5 // pred_check
        _
      $region10: #{tpu_custom_call.1} parent=5 // pred_check_branch
        %195 = sbr.rel (%p192) target = $region12
      $region11: #{tpu_custom_call.1} parent=5 // pred_region
        %s196 = ssub.s32 %s22, 1
        // Predicated region
        $region13: #{tpu_custom_call.1} parent=11 // pred_check
          %p197 = pneg %p83
        $region14: #{tpu_custom_call.1} parent=11 // pred_check_branch
          %199 = sbr.rel (%p197) target = $region16
        $region15: #{tpu_custom_call.1} parent=11 // pred_region
          %201 = vsyncadd [#allocation7], 0
          %s202 = sshll.u32 %s1, 4
          %s203 = int_to_ptr.hbm [resolvable:$true] %s202
          %s204 = sshll.u32 [#allocation6], 4
          %s205 = int_to_ptr.vmem [resolvable:$true] %s204
          %210 = dma.hbm_to_vmem [thread:$0]  %s203, 4096, %s205, [#allocation7], 128, 128, 8
        $region16: #{tpu_custom_call.1} parent=11 // pred_fallthru
          _
        // Predicated region
        $region17: #{tpu_custom_call.1} parent=11 // pred_check
          %p211 = pneg %p104
        $region18: #{tpu_custom_call.1} parent=11 // pred_check_branch
          %213 = sbr.rel (%p211) target = $region20
        $region19: #{tpu_custom_call.1} parent=11 // pred_region
          %215 = vsyncadd [#allocation7], 0
          %s216 = sshll.u32 %s2, 4
          %s217 = int_to_ptr.hbm [resolvable:$true] %s216
          %s218 = sshll.u32 [#allocation8], 4
          %s219 = int_to_ptr.vmem [resolvable:$true] %s218
          %224 = dma.hbm_to_vmem [thread:$0]  %s217, 2048, %s219, [#allocation7], 128, 128, 8
        $region20: #{tpu_custom_call.1} parent=11 // pred_fallthru
          _
      $region12: #{tpu_custom_call.1} parent=5 // pred_fallthru
        _
      %p225 = scmp.lt.s32.totalorder %s22, 2
      // Predicated region
      $region21: #{tpu_custom_call.1} parent=5 // pred_check
        %p226 = pneg %p225
      $region22: #{tpu_custom_call.1} parent=5 // pred_check_branch
        %228 = sbr.rel (%p226) target = $region24
      $region23: #{tpu_custom_call.1} parent=5 // pred_region
        // Predicated region
        $region25: #{tpu_custom_call.1} parent=23 // pred_check
          %p229 = pneg %p56
        $region26: #{tpu_custom_call.1} parent=23 // pred_check_branch
          %231 = sbr.rel (%p229) target = $region28
        $region27: #{tpu_custom_call.1} parent=23 // pred_region
          %s232 = sand.u32 %s46, 1
          %s233 = scalar_lea.sflag [#allocation4], %s232
          %s234 = sand.u32 %s46, 1
          %s235 = smul.addr %s234, 256
          %s236 = scalar_lea.vmem [#allocation3], %s235
          %s237 = smul.u32 16, %s29
          %s238 = smul.u32 2, %s30
          %240 = vsyncadd %s233, 0
          %s241 = smul.addr %s237, 2
          %s242 = sadd.s32 %s238, %s241
          %s243 = smul.addr %s242, 8
          %s244 = scalar_lea.hbm %s0, %s243
          %s245 = sshll.u32 %s244, 4
          %s246 = int_to_ptr.hbm [resolvable:$true] %s245
          %s247 = sshll.u32 %s236, 4
          %s248 = int_to_ptr.vmem [resolvable:$true] %s247
          %253 = dma.hbm_to_vmem [thread:$0]  %s246, 4096, %s248, %s233, 256, 256, 16
        $region28: #{tpu_custom_call.1} parent=23 // pred_fallthru
          _
      $region24: #{tpu_custom_call.1} parent=5 // pred_fallthru
        _
      %p254 = scmp.le.s32.totalorder 1, %s22
      %p255 = scmp.lt.s32.totalorder %s22, 3
      %p256 = pnand %p254, %p255
      %p257 = pneg %p256
      // Predicated region
      $region29: #{tpu_custom_call.1} parent=5 // pred_check
        _
      $region30: #{tpu_custom_call.1} parent=5 // pred_check_branch
        %259 = sbr.rel (%p256) target = $region32
      $region31: #{tpu_custom_call.1} parent=5 // pred_region
        %s260 = ssub.s32 %s22, 1
        %s261 = sand.u32 %s49, 1
        %s262 = scalar_lea.sflag [#allocation4], %s261
        %s263 = sand.u32 %s49, 1
        %s264 = smul.addr %s263, 256
        %s265 = scalar_lea.vmem [#allocation3], %s264
        // Predicated region
        $region33: #{tpu_custom_call.1} parent=31 // pred_check
          %p266 = pneg %p62
        $region34: #{tpu_custom_call.1} parent=31 // pred_check_branch
          %268 = sbr.rel (%p266) target = $region36
        $region35: #{tpu_custom_call.1} parent=31 // pred_region
          %270 = dma.done %s262, 4096
        $region36: #{tpu_custom_call.1} parent=31 // pred_fallthru
          _
        // Predicated region
        $region37: #{tpu_custom_call.1} parent=31 // pred_check
          %p271 = pneg %p83
        $region38: #{tpu_custom_call.1} parent=31 // pred_check_branch
          %273 = sbr.rel (%p271) target = $region40
        $region39: #{tpu_custom_call.1} parent=31 // pred_region
          %275 = dma.done [#allocation7], 4096
        $region40: #{tpu_custom_call.1} parent=31 // pred_fallthru
          _
        // Predicated region
        $region41: #{tpu_custom_call.1} parent=31 // pred_check
          %p276 = pneg %p104
        $region42: #{tpu_custom_call.1} parent=31 // pred_check_branch
          %278 = sbr.rel (%p276) target = $region44
        $region43: #{tpu_custom_call.1} parent=31 // pred_region
          %280 = dma.done [#allocation7], 2048
        $region44: #{tpu_custom_call.1} parent=31 // pred_fallthru
          _
        %s281 = sand.u32 %s49, 1
        %s282 = scalar_lea.sflag [#allocation4], %s281
        %s283 = sand.u32 %s49, 1
        %s284 = smul.addr %s283, 256
        %s285 = scalar_lea.vmem [#allocation3], %s284
        %p286 = pneg %p62
        %p287 = pneg %p59
        %p288 = pneg %p83
        %p289 = pneg %p80
        %p290 = pneg %p104
        %p291 = pneg %p101
        %p292 = pneg %p130
        %p293 = pneg %p127
        %s294 = sand.u32 %s117, 1
        %s295 = scalar_lea.sflag [#allocation5], %s294
        %s296 = sand.u32 %s117, 1
        %s297 = smul.addr %s296, 128
        %s298 = scalar_lea.vmem [#allocation9], %s297
        %p299 = pneg %p156
        %p300 = pneg %p153
        %s301 = sand.u32 %s27, 1
        %s302 = scalar_lea.sflag [#allocation11], %s301
        %s303 = sand.u32 %s143, 1
        %s304 = scalar_lea.vmem [#allocation10], %s303
        %p305 = pneg %p182
        %p306 = pneg %p179
        %s307 = sand.u32 %s27, 1
        %s308 = scalar_lea.sflag [#allocation11], %s307
        %s309 = sand.u32 %s169, 1
        %s310 = scalar_lea.vmem [#allocation12], %s309
        %s311 = smul.u32 16, %s31
        %s312 = smul.u32 2, %s32
        %s313 = smul.u32 16, %s31
        %p314 = scmp.eq.s32.totalorder %s32, 0
        // Predicated region
        $region45: #{tpu_custom_call.1} parent=31 // pred_check
          %p315 = pneg %p314
        $region46: #{tpu_custom_call.1} parent=31 // pred_check_branch
          %317 = sbr.rel (%p315) target = $region48
        $region47: #{tpu_custom_call.1} parent=31 // pred_region
          %318 = vst [vmem:[#allocation2] sm:$0xff] 0.0
          %319 = vst [vmem:[#allocation2 + $0x8] sm:$0xff] 0.0
          %320 = vst [vmem:[#allocation2 + $0x10] sm:$0xff] 0.0
          %321 = vst [vmem:[#allocation2 + $0x18] sm:$0xff] 0.0
          %322 = vst [vmem:[#allocation2 + $0x20] sm:$0xff] 0.0
          %323 = vst [vmem:[#allocation2 + $0x28] sm:$0xff] 0.0
          %324 = vst [vmem:[#allocation2 + $0x30] sm:$0xff] 0.0
          %325 = vst [vmem:[#allocation2 + $0x38] sm:$0xff] 0.0
          %326 = vst [vmem:[#allocation2 + $0x40] sm:$0xff] 0.0
          %327 = vst [vmem:[#allocation2 + $0x48] sm:$0xff] 0.0
          %328 = vst [vmem:[#allocation2 + $0x50] sm:$0xff] 0.0
          %329 = vst [vmem:[#allocation2 + $0x58] sm:$0xff] 0.0
          %330 = vst [vmem:[#allocation2 + $0x60] sm:$0xff] 0.0
          %331 = vst [vmem:[#allocation2 + $0x68] sm:$0xff] 0.0
          %332 = vst [vmem:[#allocation2 + $0x70] sm:$0xff] 0.0
          %333 = vst [vmem:[#allocation2 + $0x78] sm:$0xff] 0.0
        $region48: #{tpu_custom_call.1} parent=31 // pred_fallthru
          _
        %v334 = vld [vmem:[%s265] sm:$0xff]
        %v335 = vld [vmem:[%s265 + $0x8] sm:$0xff]
        %v336 = vld [vmem:[%s265 + $0x10] sm:$0xff]
        %v337 = vld [vmem:[%s265 + $0x18] sm:$0xff]
        %v338 = vld [vmem:[%s265 + $0x20] sm:$0xff]
        %v339 = vld [vmem:[%s265 + $0x28] sm:$0xff]
        %v340 = vld [vmem:[%s265 + $0x30] sm:$0xff]
        %v341 = vld [vmem:[%s265 + $0x38] sm:$0xff]
        %v342 = vld [vmem:[%s265 + $0x40] sm:$0xff]
        %v343 = vld [vmem:[%s265 + $0x48] sm:$0xff]
        %v344 = vld [vmem:[%s265 + $0x50] sm:$0xff]
        %v345 = vld [vmem:[%s265 + $0x58] sm:$0xff]
        %v346 = vld [vmem:[%s265 + $0x60] sm:$0xff]
        %v347 = vld [vmem:[%s265 + $0x68] sm:$0xff]
        %v348 = vld [vmem:[%s265 + $0x70] sm:$0xff]
        %v349 = vld [vmem:[%s265 + $0x78] sm:$0xff]
        %v350 = vld [vmem:[%s265 + $0x80] sm:$0xff]
        %v351 = vld [vmem:[%s265 + $0x88] sm:$0xff]
        %v352 = vld [vmem:[%s265 + $0x90] sm:$0xff]
        %v353 = vld [vmem:[%s265 + $0x98] sm:$0xff]
        %v354 = vld [vmem:[%s265 + $0xa0] sm:$0xff]
        %v355 = vld [vmem:[%s265 + $0xa8] sm:$0xff]
        %v356 = vld [vmem:[%s265 + $0xb0] sm:$0xff]
        %v357 = vld [vmem:[%s265 + $0xb8] sm:$0xff]
        %v358 = vld [vmem:[%s265 + $0xc0] sm:$0xff]
        %v359 = vld [vmem:[%s265 + $0xc8] sm:$0xff]
        %v360 = vld [vmem:[%s265 + $0xd0] sm:$0xff]
        %v361 = vld [vmem:[%s265 + $0xd8] sm:$0xff]
        %v362 = vld [vmem:[%s265 + $0xe0] sm:$0xff]
        %v363 = vld [vmem:[%s265 + $0xe8] sm:$0xff]
        %v364 = vld [vmem:[%s265 + $0xf0] sm:$0xff]
        %v365 = vld [vmem:[%s265 + $0xf8] sm:$0xff]
        %s366 = smul.u32 %s32, 256
        %s367 = scalar_lea.vmem [#allocation6], %s366
        %v368 = vld [vmem:[%s367] sm:$0xff]
        %v369 = vld [vmem:[%s367 + $0x8] sm:$0xff]
        %v370 = vld [vmem:[%s367 + $0x10] sm:$0xff]
        %v371 = vld [vmem:[%s367 + $0x18] sm:$0xff]
        %v372 = vld [vmem:[%s367 + $0x20] sm:$0xff]
        %v373 = vld [vmem:[%s367 + $0x28] sm:$0xff]
        %v374 = vld [vmem:[%s367 + $0x30] sm:$0xff]
        %v375 = vld [vmem:[%s367 + $0x38] sm:$0xff]
        %v376 = vld [vmem:[%s367 + $0x40] sm:$0xff]
        %v377 = vld [vmem:[%s367 + $0x48] sm:$0xff]
        %v378 = vld [vmem:[%s367 + $0x50] sm:$0xff]
        %v379 = vld [vmem:[%s367 + $0x58] sm:$0xff]
        %v380 = vld [vmem:[%s367 + $0x60] sm:$0xff]
        %v381 = vld [vmem:[%s367 + $0x68] sm:$0xff]
        %v382 = vld [vmem:[%s367 + $0x70] sm:$0xff]
        %v383 = vld [vmem:[%s367 + $0x78] sm:$0xff]
        %v384 = vld [vmem:[%s367 + $0x80] sm:$0xff]
        %v385 = vld [vmem:[%s367 + $0x88] sm:$0xff]
        %v386 = vld [vmem:[%s367 + $0x90] sm:$0xff]
        %v387 = vld [vmem:[%s367 + $0x98] sm:$0xff]
        %v388 = vld [vmem:[%s367 + $0xa0] sm:$0xff]
        %v389 = vld [vmem:[%s367 + $0xa8] sm:$0xff]
        %v390 = vld [vmem:[%s367 + $0xb0] sm:$0xff]
        %v391 = vld [vmem:[%s367 + $0xb8] sm:$0xff]
        %v392 = vld [vmem:[%s367 + $0xc0] sm:$0xff]
        %v393 = vld [vmem:[%s367 + $0xc8] sm:$0xff]
        %v394 = vld [vmem:[%s367 + $0xd0] sm:$0xff]
        %v395 = vld [vmem:[%s367 + $0xd8] sm:$0xff]
        %v396 = vld [vmem:[%s367 + $0xe0] sm:$0xff]
        %v397 = vld [vmem:[%s367 + $0xe8] sm:$0xff]
        %v398 = vld [vmem:[%s367 + $0xf0] sm:$0xff]
        %v399 = vld [vmem:[%s367 + $0xf8] sm:$0xff]
        %v400 = vld [vmem:[#allocation2] sm:$0xff]
        %v401 = vld [vmem:[#allocation2 + $0x8] sm:$0xff]
        %v402 = vld [vmem:[#allocation2 + $0x10] sm:$0xff]
        %v403 = vld [vmem:[#allocation2 + $0x18] sm:$0xff]
        %v404 = vld [vmem:[#allocation2 + $0x20] sm:$0xff]
        %v405 = vld [vmem:[#allocation2 + $0x28] sm:$0xff]
        %v406 = vld [vmem:[#allocation2 + $0x30] sm:$0xff]
        %v407 = vld [vmem:[#allocation2 + $0x38] sm:$0xff]
        %v408 = vld [vmem:[#allocation2 + $0x40] sm:$0xff]
        %v409 = vld [vmem:[#allocation2 + $0x48] sm:$0xff]
        %v410 = vld [vmem:[#allocation2 + $0x50] sm:$0xff]
        %v411 = vld [vmem:[#allocation2 + $0x58] sm:$0xff]
        %v412 = vld [vmem:[#allocation2 + $0x60] sm:$0xff]
        %v413 = vld [vmem:[#allocation2 + $0x68] sm:$0xff]
        %v414 = vld [vmem:[#allocation2 + $0x70] sm:$0xff]
        %v415 = vld [vmem:[#allocation2 + $0x78] sm:$0xff]
        %416 = vmatpush.msra.mxu0 %v383
        %417 = vmatpush.msra.mxu0 %v382
        %418 = vmatpush.msra.mxu0 %v381
        %419 = vmatpush.msra.mxu0 %v380
        %420 = vmatpush.msra.mxu0 %v379
        %421 = vmatpush.msra.mxu0 %v378
        %422 = vmatpush.msra.mxu0 %v377
        %423 = vmatpush.msra.mxu0 %v376
        %424 = vmatpush.msra.mxu0 %v375
        %425 = vmatpush.msra.mxu0 %v374
        %426 = vmatpush.msra.mxu0 %v373
        %427 = vmatpush.msra.mxu0 %v372
        %428 = vmatpush.msra.mxu0 %v371
        %429 = vmatpush.msra.mxu0 %v370
        %430 = vmatpush.msra.mxu0 %v369
        %431 = vmatpush.msra.mxu0 %v368
        %432 = vmatmul.f32.gmra.mxu0 %v334
        %v433 = vpop.f32.mrf.mxu0
        %v434 = vadd.f32 0.0, %v433
        %435 = vmatmul.f32.gmra.mxu0 %v336
        %v436 = vpop.f32.mrf.mxu0
        %v437 = vadd.f32 0.0, %v436
        %438 = vmatmul.f32.gmra.mxu0 %v338
        %v439 = vpop.f32.mrf.mxu0
        %v440 = vadd.f32 0.0, %v439
        %441 = vmatmul.f32.gmra.mxu0 %v340
        %v442 = vpop.f32.mrf.mxu0
        %v443 = vadd.f32 0.0, %v442
        %444 = vmatmul.f32.gmra.mxu0 %v342
        %v445 = vpop.f32.mrf.mxu0
        %v446 = vadd.f32 0.0, %v445
        %447 = vmatmul.f32.gmra.mxu0 %v344
        %v448 = vpop.f32.mrf.mxu0
        %v449 = vadd.f32 0.0, %v448
        %450 = vmatmul.f32.gmra.mxu0 %v346
        %v451 = vpop.f32.mrf.mxu0
        %v452 = vadd.f32 0.0, %v451
        %453 = vmatmul.f32.gmra.mxu0 %v348
        %v454 = vpop.f32.mrf.mxu0
        %v455 = vadd.f32 0.0, %v454
        %456 = vmatmul.f32.gmra.mxu0 %v350
        %v457 = vpop.f32.mrf.mxu0
        %v458 = vadd.f32 0.0, %v457
        %459 = vmatmul.f32.gmra.mxu0 %v352
        %v460 = vpop.f32.mrf.mxu0
        %v461 = vadd.f32 0.0, %v460
        %462 = vmatmul.f32.gmra.mxu0 %v354
        %v463 = vpop.f32.mrf.mxu0
        %v464 = vadd.f32 0.0, %v463
        %465 = vmatmul.f32.gmra.mxu0 %v356
        %v466 = vpop.f32.mrf.mxu0
        %v467 = vadd.f32 0.0, %v466
        %468 = vmatmul.f32.gmra.mxu0 %v358
        %v469 = vpop.f32.mrf.mxu0
        %v470 = vadd.f32 0.0, %v469
        %471 = vmatmul.f32.gmra.mxu0 %v360
        %v472 = vpop.f32.mrf.mxu0
        %v473 = vadd.f32 0.0, %v472
        %474 = vmatmul.f32.gmra.mxu0 %v362
        %v475 = vpop.f32.mrf.mxu0
        %v476 = vadd.f32 0.0, %v475
        %477 = vmatmul.f32.gmra.mxu0 %v364
        %v478 = vpop.f32.mrf.mxu0
        %v479 = vadd.f32 0.0, %v478
        %480 = vdwg.mxu0
        %481 = vmatpush.msra.mxu0 %v399
        %482 = vmatpush.msra.mxu0 %v398
        %483 = vmatpush.msra.mxu0 %v397
        %484 = vmatpush.msra.mxu0 %v396
        %485 = vmatpush.msra.mxu0 %v395
        %486 = vmatpush.msra.mxu0 %v394
        %487 = vmatpush.msra.mxu0 %v393
        %488 = vmatpush.msra.mxu0 %v392
        %489 = vmatpush.msra.mxu0 %v391
        %490 = vmatpush.msra.mxu0 %v390
        %491 = vmatpush.msra.mxu0 %v389
        %492 = vmatpush.msra.mxu0 %v388
        %493 = vmatpush.msra.mxu0 %v387
        %494 = vmatpush.msra.mxu0 %v386
        %495 = vmatpush.msra.mxu0 %v385
        %496 = vmatpush.msra.mxu0 %v384
        %497 = vmatmul.f32.gmra.mxu0 %v335
        %v498 = vpop.f32.mrf.mxu0
        %v499 = vadd.f32 %v434, %v498
        %500 = vmatmul.f32.gmra.mxu0 %v337
        %v501 = vpop.f32.mrf.mxu0
        %v502 = vadd.f32 %v437, %v501
        %503 = vmatmul.f32.gmra.mxu0 %v339
        %v504 = vpop.f32.mrf.mxu0
        %v505 = vadd.f32 %v440, %v504
        %506 = vmatmul.f32.gmra.mxu0 %v341
        %v507 = vpop.f32.mrf.mxu0
        %v508 = vadd.f32 %v443, %v507
        %509 = vmatmul.f32.gmra.mxu0 %v343
        %v510 = vpop.f32.mrf.mxu0
        %v511 = vadd.f32 %v446, %v510
        %512 = vmatmul.f32.gmra.mxu0 %v345
        %v513 = vpop.f32.mrf.mxu0
        %v514 = vadd.f32 %v449, %v513
        %515 = vmatmul.f32.gmra.mxu0 %v347
        %v516 = vpop.f32.mrf.mxu0
        %v517 = vadd.f32 %v452, %v516
        %518 = vmatmul.f32.gmra.mxu0 %v349
        %v519 = vpop.f32.mrf.mxu0
        %v520 = vadd.f32 %v455, %v519
        %521 = vmatmul.f32.gmra.mxu0 %v351
        %v522 = vpop.f32.mrf.mxu0
        %v523 = vadd.f32 %v458, %v522
        %524 = vmatmul.f32.gmra.mxu0 %v353
        %v525 = vpop.f32.mrf.mxu0
        %v526 = vadd.f32 %v461, %v525
        %527 = vmatmul.f32.gmra.mxu0 %v355
        %v528 = vpop.f32.mrf.mxu0
        %v529 = vadd.f32 %v464, %v528
        %530 = vmatmul.f32.gmra.mxu0 %v357
        %v531 = vpop.f32.mrf.mxu0
        %v532 = vadd.f32 %v467, %v531
        %533 = vmatmul.f32.gmra.mxu0 %v359
        %v534 = vpop.f32.mrf.mxu0
        %v535 = vadd.f32 %v470, %v534
        %536 = vmatmul.f32.gmra.mxu0 %v361
        %v537 = vpop.f32.mrf.mxu0
        %v538 = vadd.f32 %v473, %v537
        %539 = vmatmul.f32.gmra.mxu0 %v363
        %v540 = vpop.f32.mrf.mxu0
        %v541 = vadd.f32 %v476, %v540
        %542 = vmatmul.f32.gmra.mxu0 %v365
        %v543 = vpop.f32.mrf.mxu0
        %v544 = vadd.f32 %v479, %v543
        %545 = vdwg.mxu0
        %v546 = vadd.f32 %v400, %v499
        %v547 = vadd.f32 %v401, %v502
        %v548 = vadd.f32 %v402, %v505
        %v549 = vadd.f32 %v403, %v508
        %v550 = vadd.f32 %v404, %v511
        %v551 = vadd.f32 %v405, %v514
        %v552 = vadd.f32 %v406, %v517
        %v553 = vadd.f32 %v407, %v520
        %v554 = vadd.f32 %v408, %v523
        %v555 = vadd.f32 %v409, %v526
        %v556 = vadd.f32 %v410, %v529
        %v557 = vadd.f32 %v411, %v532
        %v558 = vadd.f32 %v412, %v535
        %v559 = vadd.f32 %v413, %v538
        %v560 = vadd.f32 %v414, %v541
        %v561 = vadd.f32 %v415, %v544
        %562 = vst [vmem:[#allocation2] sm:$0xff] %v546
        %563 = vst [vmem:[#allocation2 + $0x8] sm:$0xff] %v547
        %564 = vst [vmem:[#allocation2 + $0x10] sm:$0xff] %v548
        %565 = vst [vmem:[#allocation2 + $0x18] sm:$0xff] %v549
        %566 = vst [vmem:[#allocation2 + $0x20] sm:$0xff] %v550
        %567 = vst [vmem:[#allocation2 + $0x28] sm:$0xff] %v551
        %568 = vst [vmem:[#allocation2 + $0x30] sm:$0xff] %v552
        %569 = vst [vmem:[#allocation2 + $0x38] sm:$0xff] %v553
        %570 = vst [vmem:[#allocation2 + $0x40] sm:$0xff] %v554
        %571 = vst [vmem:[#allocation2 + $0x48] sm:$0xff] %v555
        %572 = vst [vmem:[#allocation2 + $0x50] sm:$0xff] %v556
        %573 = vst [vmem:[#allocation2 + $0x58] sm:$0xff] %v557
        %574 = vst [vmem:[#allocation2 + $0x60] sm:$0xff] %v558
        %575 = vst [vmem:[#allocation2 + $0x68] sm:$0xff] %v559
        %576 = vst [vmem:[#allocation2 + $0x70] sm:$0xff] %v560
        %577 = vst [vmem:[#allocation2 + $0x78] sm:$0xff] %v561
        // Predicated region
        $region49: #{tpu_custom_call.1} parent=31 // pred_check
          %p578 = pneg %p314
        $region50: #{tpu_custom_call.1} parent=31 // pred_check_branch
          %580 = sbr.rel (%p578) target = $region52
        $region51: #{tpu_custom_call.1} parent=31 // pred_region
          %v581 = vld [vmem:[#allocation2] sm:$0xff]
          %v582 = vld [vmem:[#allocation2 + $0x8] sm:$0xff]
          %v583 = vld [vmem:[#allocation2 + $0x10] sm:$0xff]
          %v584 = vld [vmem:[#allocation2 + $0x18] sm:$0xff]
          %v585 = vld [vmem:[#allocation2 + $0x20] sm:$0xff]
          %v586 = vld [vmem:[#allocation2 + $0x28] sm:$0xff]
          %v587 = vld [vmem:[#allocation2 + $0x30] sm:$0xff]
          %v588 = vld [vmem:[#allocation2 + $0x38] sm:$0xff]
          %v589 = vld [vmem:[#allocation2 + $0x40] sm:$0xff]
          %v590 = vld [vmem:[#allocation2 + $0x48] sm:$0xff]
          %v591 = vld [vmem:[#allocation2 + $0x50] sm:$0xff]
          %v592 = vld [vmem:[#allocation2 + $0x58] sm:$0xff]
          %v593 = vld [vmem:[#allocation2 + $0x60] sm:$0xff]
          %v594 = vld [vmem:[#allocation2 + $0x68] sm:$0xff]
          %v595 = vld [vmem:[#allocation2 + $0x70] sm:$0xff]
          %v596 = vld [vmem:[#allocation2 + $0x78] sm:$0xff]
          %v597 = vld [vmem:[#allocation8] sm:$0xff]
          %v598 = vld [vmem:[#allocation8 + $0x8] sm:$0xff]
          %v599 = vld [vmem:[#allocation8 + $0x10] sm:$0xff]
          %v600 = vld [vmem:[#allocation8 + $0x18] sm:$0xff]
          %v601 = vld [vmem:[#allocation8 + $0x20] sm:$0xff]
          %v602 = vld [vmem:[#allocation8 + $0x28] sm:$0xff]
          %v603 = vld [vmem:[#allocation8 + $0x30] sm:$0xff]
          %v604 = vld [vmem:[#allocation8 + $0x38] sm:$0xff]
          %v605 = vld [vmem:[#allocation8 + $0x40] sm:$0xff]
          %v606 = vld [vmem:[#allocation8 + $0x48] sm:$0xff]
          %v607 = vld [vmem:[#allocation8 + $0x50] sm:$0xff]
          %v608 = vld [vmem:[#allocation8 + $0x58] sm:$0xff]
          %v609 = vld [vmem:[#allocation8 + $0x60] sm:$0xff]
          %v610 = vld [vmem:[#allocation8 + $0x68] sm:$0xff]
          %v611 = vld [vmem:[#allocation8 + $0x70] sm:$0xff]
          %v612 = vld [vmem:[#allocation8 + $0x78] sm:$0xff]
          %613 = vmatpush.msra.mxu0 %v612
          %614 = vmatpush.msra.mxu0 %v611
          %615 = vmatpush.msra.mxu0 %v610
          %616 = vmatpush.msra.mxu0 %v609
          %617 = vmatpush.msra.mxu0 %v608
          %618 = vmatpush.msra.mxu0 %v607
          %619 = vmatpush.msra.mxu0 %v606
          %620 = vmatpush.msra.mxu0 %v605
          %621 = vmatpush.msra.mxu0 %v604
          %622 = vmatpush.msra.mxu0 %v603
          %623 = vmatpush.msra.mxu0 %v602
          %624 = vmatpush.msra.mxu0 %v601
          %625 = vmatpush.msra.mxu0 %v600
          %626 = vmatpush.msra.mxu0 %v599
          %627 = vmatpush.msra.mxu0 %v598
          %628 = vmatpush.msra.mxu0 %v597
          %629 = vmatmul.f32.gmra.mxu0 %v581
          %v630 = vpop.f32.mrf.mxu0
          %v631 = vadd.f32 0.0, %v630
          %632 = vmatmul.f32.gmra.mxu0 %v582
          %v633 = vpop.f32.mrf.mxu0
          %v634 = vadd.f32 0.0, %v633
          %635 = vmatmul.f32.gmra.mxu0 %v583
          %v636 = vpop.f32.mrf.mxu0
          %v637 = vadd.f32 0.0, %v636
          %638 = vmatmul.f32.gmra.mxu0 %v584
          %v639 = vpop.f32.mrf.mxu0
          %v640 = vadd.f32 0.0, %v639
          %641 = vmatmul.f32.gmra.mxu0 %v585
          %v642 = vpop.f32.mrf.mxu0
          %v643 = vadd.f32 0.0, %v642
          %644 = vmatmul.f32.gmra.mxu0 %v586
          %v645 = vpop.f32.mrf.mxu0
          %v646 = vadd.f32 0.0, %v645
          %647 = vmatmul.f32.gmra.mxu0 %v587
          %v648 = vpop.f32.mrf.mxu0
          %v649 = vadd.f32 0.0, %v648
          %650 = vmatmul.f32.gmra.mxu0 %v588
          %v651 = vpop.f32.mrf.mxu0
          %v652 = vadd.f32 0.0, %v651
          %653 = vmatmul.f32.gmra.mxu0 %v589
          %v654 = vpop.f32.mrf.mxu0
          %v655 = vadd.f32 0.0, %v654
          %656 = vmatmul.f32.gmra.mxu0 %v590
          %v657 = vpop.f32.mrf.mxu0
          %v658 = vadd.f32 0.0, %v657
          %659 = vmatmul.f32.gmra.mxu0 %v591
          %v660 = vpop.f32.mrf.mxu0
          %v661 = vadd.f32 0.0, %v660
          %662 = vmatmul.f32.gmra.mxu0 %v592
          %v663 = vpop.f32.mrf.mxu0
          %v664 = vadd.f32 0.0, %v663
          %665 = vmatmul.f32.gmra.mxu0 %v593
          %v666 = vpop.f32.mrf.mxu0
          %v667 = vadd.f32 0.0, %v666
          %668 = vmatmul.f32.gmra.mxu0 %v594
          %v669 = vpop.f32.mrf.mxu0
          %v670 = vadd.f32 0.0, %v669
          %671 = vmatmul.f32.gmra.mxu0 %v595
          %v672 = vpop.f32.mrf.mxu0
          %v673 = vadd.f32 0.0, %v672
          %674 = vmatmul.f32.gmra.mxu0 %v596
          %v675 = vpop.f32.mrf.mxu0
          %v676 = vadd.f32 0.0, %v675
          %677 = vdwg.mxu0
          %678 = vst [vmem:[%s298] sm:$0xff] %v631
          %679 = vst [vmem:[%s298 + $0x8] sm:$0xff] %v634
          %680 = vst [vmem:[%s298 + $0x10] sm:$0xff] %v637
          %681 = vst [vmem:[%s298 + $0x18] sm:$0xff] %v640
          %682 = vst [vmem:[%s298 + $0x20] sm:$0xff] %v643
          %683 = vst [vmem:[%s298 + $0x28] sm:$0xff] %v646
          %684 = vst [vmem:[%s298 + $0x30] sm:$0xff] %v649
          %685 = vst [vmem:[%s298 + $0x38] sm:$0xff] %v652
          %686 = vst [vmem:[%s298 + $0x40] sm:$0xff] %v655
          %687 = vst [vmem:[%s298 + $0x48] sm:$0xff] %v658
          %688 = vst [vmem:[%s298 + $0x50] sm:$0xff] %v661
          %689 = vst [vmem:[%s298 + $0x58] sm:$0xff] %v664
          %690 = vst [vmem:[%s298 + $0x60] sm:$0xff] %v667
          %691 = vst [vmem:[%s298 + $0x68] sm:$0xff] %v670
          %692 = vst [vmem:[%s298 + $0x70] sm:$0xff] %v673
          %693 = vst [vmem:[%s298 + $0x78] sm:$0xff] %v676
          %v694 = vadd.f32 %v631, %v634
          %v695 = vadd.f32 %v694, %v637
          %v696 = vadd.f32 %v695, %v640
          %v697 = vadd.f32 %v696, %v643
          %v698 = vadd.f32 %v697, %v646
          %v699 = vadd.f32 %v698, %v649
          %v700 = vadd.f32 %v699, %v652
          %v701 = vadd.f32 %v700, %v655
          %v702 = vadd.f32 %v701, %v658
          %v703 = vadd.f32 %v702, %v661
          %v704 = vadd.f32 %v703, %v664
          %v705 = vadd.f32 %v704, %v667
          %v706 = vadd.f32 %v705, %v670
          %v707 = vadd.f32 %v706, %v673
          %v708 = vadd.f32 %v707, %v676
          %v709 = vrot.slane %v708, 4
          %v710 = vadd.f32 %v708, %v709
          %v711 = vrot.slane %v710, 2
          %v712 = vadd.f32 %v710, %v711
          %v713 = vrot.slane %v712, 1
          %v714 = vadd.f32 %v712, %v713
          %715 = vst [vmem:[%s304] sm:$0x1] %v714
          %v716 = vmul.f32 %v631, %v631
          %v717 = vmul.f32 %v634, %v634
          %v718 = vmul.f32 %v637, %v637
          %v719 = vmul.f32 %v640, %v640
          %v720 = vmul.f32 %v643, %v643
          %v721 = vmul.f32 %v646, %v646
          %v722 = vmul.f32 %v649, %v649
          %v723 = vmul.f32 %v652, %v652
          %v724 = vmul.f32 %v655, %v655
          %v725 = vmul.f32 %v658, %v658
          %v726 = vmul.f32 %v661, %v661
          %v727 = vmul.f32 %v664, %v664
          %v728 = vmul.f32 %v667, %v667
          %v729 = vmul.f32 %v670, %v670
          %v730 = vmul.f32 %v673, %v673
          %v731 = vmul.f32 %v676, %v676
          %v732 = vadd.f32 %v716, %v717
          %v733 = vadd.f32 %v732, %v718
          %v734 = vadd.f32 %v733, %v719
          %v735 = vadd.f32 %v734, %v720
          %v736 = vadd.f32 %v735, %v721
          %v737 = vadd.f32 %v736, %v722
          %v738 = vadd.f32 %v737, %v723
          %v739 = vadd.f32 %v738, %v724
          %v740 = vadd.f32 %v739, %v725
          %v741 = vadd.f32 %v740, %v726
          %v742 = vadd.f32 %v741, %v727
          %v743 = vadd.f32 %v742, %v728
          %v744 = vadd.f32 %v743, %v729
          %v745 = vadd.f32 %v744, %v730
          %v746 = vadd.f32 %v745, %v731
          %v747 = vrot.slane %v746, 4
          %v748 = vadd.f32 %v746, %v747
          %v749 = vrot.slane %v748, 2
          %v750 = vadd.f32 %v748, %v749
          %v751 = vrot.slane %v750, 1
          %v752 = vadd.f32 %v750, %v751
          %753 = vst [vmem:[%s310] sm:$0x1] %v752
        $region52: #{tpu_custom_call.1} parent=31 // pred_fallthru
          _
        %s754 = sand.u32 %s117, 1
        %s755 = scalar_lea.sflag [#allocation5], %s754
        %s756 = sand.u32 %s117, 1
        %s757 = smul.addr %s756, 128
        %s758 = scalar_lea.vmem [#allocation9], %s757
        %s759 = sand.u32 %s27, 1
        %s760 = scalar_lea.sflag [#allocation11], %s759
        %s761 = sand.u32 %s143, 1
        %s762 = scalar_lea.vmem [#allocation10], %s761
        %s763 = sand.u32 %s27, 1
        %s764 = scalar_lea.sflag [#allocation11], %s763
        %s765 = sand.u32 %s169, 1
        %s766 = scalar_lea.vmem [#allocation12], %s765
        // Predicated region
        $region53: #{tpu_custom_call.1} parent=31 // pred_check
          %p767 = pneg %p127
        $region54: #{tpu_custom_call.1} parent=31 // pred_check_branch
          %769 = sbr.rel (%p767) target = $region56
        $region55: #{tpu_custom_call.1} parent=31 // pred_region
          %s770 = smul.u32 16, %s31
          %772 = vsyncadd %s755, 0
          %s773 = smul.addr %s770, 8
          %s774 = scalar_lea.hbm %s3, %s773
          %s775 = sshll.u32 %s758, 4
          %s776 = int_to_ptr.vmem [resolvable:$true] %s775
          %s777 = sshll.u32 %s774, 4
          %s778 = int_to_ptr.hbm [resolvable:$true] %s777
          %783 = dma.vmem_to_hbm [thread:$0]  %s776, 2048, %s778, %s755, 128, 128, 8
        $region56: #{tpu_custom_call.1} parent=31 // pred_fallthru
          _
        // Predicated region
        $region57: #{tpu_custom_call.1} parent=31 // pred_check
          %p784 = pneg %p153
        $region58: #{tpu_custom_call.1} parent=31 // pred_check_branch
          %786 = sbr.rel (%p784) target = $region60
        $region59: #{tpu_custom_call.1} parent=31 // pred_region
          %788 = vsyncadd %s760, 0
          %s789 = scalar_lea.hbm %s4, %s31
          %s791 = sshll.u32 %s762, 4
          %s792 = int_to_ptr.vmem [resolvable:$true] %s791
          %s793 = sshll.u32 %s789, 4
          %s794 = int_to_ptr.hbm [resolvable:$true] %s793
          %796 = dma.vmem_to_hbm [thread:$0]  %s792, 16, %s794, %s760
        $region60: #{tpu_custom_call.1} parent=31 // pred_fallthru
          _
        // Predicated region
        $region61: #{tpu_custom_call.1} parent=31 // pred_check
          %p797 = pneg %p179
        $region62: #{tpu_custom_call.1} parent=31 // pred_check_branch
          %799 = sbr.rel (%p797) target = $region64
        $region63: #{tpu_custom_call.1} parent=31 // pred_region
          %801 = vsyncadd %s764, 0
          %s802 = scalar_lea.hbm %s5, %s31
          %s804 = sshll.u32 %s766, 4
          %s805 = int_to_ptr.vmem [resolvable:$true] %s804
          %s806 = sshll.u32 %s802, 4
          %s807 = int_to_ptr.hbm [resolvable:$true] %s806
          %809 = dma.vmem_to_hbm [thread:$0]  %s805, 16, %s807, %s764
        $region64: #{tpu_custom_call.1} parent=31 // pred_fallthru
          _
      $region32: #{tpu_custom_call.1} parent=5 // pred_fallthru
        _
      %p810 = scmp.le.s32.totalorder 2, %s22
      // Predicated region
      $region65: #{tpu_custom_call.1} parent=5 // pred_check
        %p811 = pneg %p810
      $region66: #{tpu_custom_call.1} parent=5 // pred_check_branch
        %813 = sbr.rel (%p811) target = $region68
      $region67: #{tpu_custom_call.1} parent=5 // pred_region
        %s814 = ssub.s32 %s22, 2
        // Predicated region
        $region69: #{tpu_custom_call.1} parent=67 // pred_check
          %p815 = pneg %p133
        $region70: #{tpu_custom_call.1} parent=67 // pred_check_branch
          %817 = sbr.rel (%p815) target = $region72
        $region71: #{tpu_custom_call.1} parent=67 // pred_region
          %s818 = sand.u32 %s118, 1
          %s819 = scalar_lea.sflag [#allocation5], %s818
          %s820 = sand.u32 %s118, 1
          %s821 = smul.addr %s820, 128
          %s822 = scalar_lea.vmem [#allocation9], %s821
          %824 = dma.done %s819, 2048
        $region72: #{tpu_custom_call.1} parent=67 // pred_fallthru
          _
        // Predicated region
        $region73: #{tpu_custom_call.1} parent=67 // pred_check
          %p825 = pneg %p159
        $region74: #{tpu_custom_call.1} parent=67 // pred_check_branch
          %827 = sbr.rel (%p825) target = $region76
        $region75: #{tpu_custom_call.1} parent=67 // pred_region
          %s828 = sand.u32 %s28, 1
          %s829 = scalar_lea.sflag [#allocation11], %s828
          %s830 = sand.u32 %s144, 1
          %s831 = scalar_lea.vmem [#allocation10], %s830
          %833 = dma.done %s829, 16
        $region76: #{tpu_custom_call.1} parent=67 // pred_fallthru
          _
        // Predicated region
        $region77: #{tpu_custom_call.1} parent=67 // pred_check
          %p834 = pneg %p185
        $region78: #{tpu_custom_call.1} parent=67 // pred_check_branch
          %836 = sbr.rel (%p834) target = $region80
        $region79: #{tpu_custom_call.1} parent=67 // pred_region
          %s837 = sand.u32 %s28, 1
          %s838 = scalar_lea.sflag [#allocation11], %s837
          %s839 = sand.u32 %s170, 1
          %s840 = scalar_lea.vmem [#allocation12], %s839
          %842 = dma.done %s838, 16
        $region80: #{tpu_custom_call.1} parent=67 // pred_fallthru
          _
      $region68: #{tpu_custom_call.1} parent=5 // pred_fallthru
        _
    $region6: #{tpu_custom_call.1} parent=1 // loop_footer
      %s26 = sadd.s32 1, %s22
    $region7: #{tpu_custom_call.1} parent=1 // loop_footer_branch
      %21 = sbr.rel target = $region3
    $region8: #{tpu_custom_call.1} parent=1 // loop_exit
      _
    %843 = vsyncpa [#allocation4], 1
    %s844 = scalar_lea.sflag [#allocation4], 1
    %845 = vsyncpa %s844, 1
    %846 = vsyncpa [#allocation7], 1
    %847 = vsyncpa [#allocation5], 1
    %s848 = scalar_lea.sflag [#allocation5], 1
    %849 = vsyncpa %s848, 1
    %850 = vsyncpa [#allocation11], 1
    %s851 = scalar_lea.sflag [#allocation11], 1
    %852 = vsyncpa %s851, 1

</llo_original>
